<compile_context>
chip_gen: v5e
topology: v5e:2x2
jax: 0.10.0
libtpu: 0.0.40
codegen_flags: <defaults>
</compile_context>

<pallas_src>
import functools

import jax
import jax.numpy as jnp
from jax.experimental import pallas as pl
from jax.experimental.pallas import tpu as pltpu


def _round_up(a, b):
    return ((a + b - 1) // b) * b


def _largest_divisor_le(n, limit):
    """Largest divisor of n that is <= limit (limit is small, <= ~64)."""
    limit = max(1, min(n, limit))
    for d in range(limit, 0, -1):
        if n % d == 0:
            return d
    return 1


def _if_encoder_kernel(x_ref, out_ref, v_ref, *, alpha, beta, v_th, v_reset,
                       v_leak, tb, ch, n_chunks):
    """One grid step = `tb` time steps of the encoder on one (TP, 128) tile.

    x_ref   : (TP, 128)      VMEM, constant input current (resident across t)
    out_ref : (TB, TP, 128)  VMEM, spikes for this time block
    v_ref   : (TP, 128)      VMEM f32 scratch, membrane voltage carried across
                             time blocks for a fixed spatial tile

    The tile is processed in row chunks of `ch` rows so the chunk's voltage
    and input drive live in vregs for the whole statically unrolled `tb`-step
    time loop; v_ref is loaded/stored once per chunk per time block and only
    spikes are stored per step.
    """
    @pl.when(pl.program_id(1) == 0)          # first time block of this P-tile
    def _():
        v_ref[...] = jnp.zeros_like(v_ref)

    @pl.loop(0, n_chunks)
    def _(c):
        r0 = pl.multiple_of(c * ch, ch)
        rows = pl.ds(r0, ch)
        # Constant over time: hoisted out of the unrolled time loop.
        cx = alpha * (x_ref[rows, :] + v_leak)
        v = v_ref[rows, :]
        for i in range(tb):                  # static unroll (time steps)
            # v += dt*tau_mem_inv*((v_leak - v) + x)  ==  cx + (1-alpha)*v
            v = cx + beta * v
            spike = v > v_th
            out_ref[i, rows, :] = spike.astype(out_ref.dtype)
            v = jnp.where(spike, v_reset, v)  # reset (exact since z in {0,1})
        v_ref[rows, :] = v                   # one voltage store per chunk


def if_constant_current_encode(x, seq_length, tau_mem_inv=1.0 / 0.01, v_th=1.0,
                               v_reset=0.0, dt=0.001, v_leak=0.0,
                               spike_dtype=jnp.float32):
    """Pallas TPU implementation of IFConstantCurrentEncoder.forward.

    x: float array of arbitrary shape (e.g. NCHW).
    Returns `spike_dtype` array of shape (seq_length, *x.shape).
    """
    x = jnp.asarray(x, jnp.float32)
    orig_shape = x.shape
    n = int(x.size)
    T = int(seq_length)
    assert T >= 1 and n >= 1

    lanes = 128
    out_itemsize = jnp.dtype(spike_dtype).itemsize
    sub = 8 * max(1, 4 // out_itemsize)       # sublane mult: f32->8 bf16->16 i8->32

    rows = pl.cdiv(n, lanes)                  # rows needed to hold n elements
    ra = _round_up(rows, sub)                 # rows after sublane alignment
    m = ra // sub                             # tileable units of `sub` rows

    # Spatial tile TP: a multiple of `sub` that divides `ra` exactly (no extra
    # row padding) and leaves >= 2 spatial tiles when possible (v7x has two
    # TensorCores and the time axis must stay sequential).  Cap at 512 rows.
    cap_units = max(1, 512 // sub)
    limit_units = min(cap_units, max(1, m // 2)) if m >= 2 else 1
    TP = _largest_divisor_le(m, limit_units) * sub
    P = ra                                    # TP divides ra by construction
    padded_n = P * lanes

    # Time block TB: prefer a divisor of T so T_pad == T (no post-kernel strip
    # copy); only pad time when T has no usable divisor (e.g. large prime T).
    tb_cap = 32 if out_itemsize >= 4 else 64
    TB = _largest_divisor_le(T, tb_cap)
    if TB < min(T, 8):
        TB = min(T, tb_cap)
    n_tblk = pl.cdiv(T, TB)
    T_pad = n_tblk * TB

    # Inner row chunk CH: small enough that v / cx stay register-resident.
    if TP % 32 == 0:
        CH = 32
    elif TP % 16 == 0:
        CH = 16
    else:
        CH = 8
    n_chunks = TP // CH

    x_flat = x.reshape(-1)
    if padded_n != n:
        # Zero-pad to a whole (P, 128) slab; the padded tail is computed too
        # (harmless) and stripped from the result below.
        x_flat = jnp.zeros((padded_n,), jnp.float32).at[:n].set(x_flat)
    x2d = x_flat.reshape(P, lanes)

    alpha = float(dt) * float(tau_mem_inv)
    beta = 1.0 - alpha
    kernel = functools.partial(
        _if_encoder_kernel,
        alpha=alpha, beta=beta, v_th=float(v_th), v_reset=float(v_reset),
        v_leak=float(v_leak), tb=TB, ch=CH, n_chunks=n_chunks)

    # VMEM budget: double-buffered output block + double-buffered x tile +
    # v scratch + headroom for temporaries / compiler scratch.
    vmem_limit = int(2 * TB * TP * lanes * out_itemsize
                     + 2 * TP * lanes * 4
                     + TP * lanes * 4
                     + (4 << 20))
    vmem_limit = min(max(vmem_limit, 16 << 20), 48 << 20)

    cost = pl.CostEstimate(
        flops=6 * T_pad * padded_n,
        transcendentals=0,
        bytes_accessed=int(T_pad * padded_n * out_itemsize + padded_n * 4))

    out = pl.pallas_call(
        kernel,
        out_shape=jax.ShapeDtypeStruct((T_pad, P, lanes), spike_dtype),
        grid_spec=pltpu.PrefetchScalarGridSpec(
            num_scalar_prefetch=0,
            grid=(P // TP, n_tblk),           # (spatial tiles, time blocks)
            in_specs=[pl.BlockSpec((TP, lanes), lambda p, t: (p, 0))],
            out_specs=pl.BlockSpec((TB, TP, lanes), lambda p, t: (t, p, 0)),
            scratch_shapes=[pltpu.VMEM((TP, lanes), jnp.float32)],
        ),
        compiler_params=pltpu.CompilerParams(
            # Spatial tiles are independent (megacore); the time axis carries
            # the voltage scratch and must stay sequential.
            dimension_semantics=("parallel", "arbitrary"),
            vmem_limit_bytes=vmem_limit,
        ),
        cost_estimate=cost,
    )(x2d)

    # Strip padding (copies only in the rare case padding was actually needed).
    if T_pad != T:
        out = out[:T]
    if padded_n != n:
        # TODO(synk): consumers that can accept the padded (T, P, 128) slab
        # directly would avoid this full-array strip copy.
        out = out.reshape(T, padded_n)[:, :n]
    return out.reshape((T,) + orig_shape)


class IFConstantCurrentEncoder:
    """Thin stateless wrapper mirroring the PyTorch module interface."""

    def __init__(self, seq_length, tau_mem_inv=1.0 / 0.01, v_th=1.0,
                 v_reset=0.0, dt: float = 0.001, spike_dtype=jnp.float32):
        self.seq_length = seq_length
        self.tau_mem_inv = tau_mem_inv
        self.v_th = v_th
        self.v_reset = v_reset
        self.dt = dt
        self.spike_dtype = spike_dtype

    def __call__(self, x):
        return if_constant_current_encode(
            x, self.seq_length, tau_mem_inv=self.tau_mem_inv,
            v_th=self.v_th, v_reset=self.v_reset, dt=self.dt,
            spike_dtype=self.spike_dtype)


def _reference(x, seq_length, tau_mem_inv, v_th, v_reset, dt, v_leak=0.0):
    """Pure-JAX reference using the same op ordering as the kernel.

    Algebraically identical to the norse update
        dv = dt*tau_mem_inv*((v_leak - v) + x); v += dv
        z  = heaviside(v - v_th);               v -= z*(v - v_reset)
    (only floating-point reassociation differs).
    """
    alpha = float(dt) * float(tau_mem_inv)
    beta = 1.0 - alpha
    cx = alpha * (x + v_leak)

    def step(v, _):
        v = cx + beta * v
        spike = v > v_th
        z = spike.astype(jnp.float32)
        v = jnp.where(spike, v_reset, v)
        return v, z

    _, spikes = jax.lax.scan(step, jnp.zeros_like(x), None, length=seq_length)
    return spikes


if __name__ == "__main__":
    key = jax.random.PRNGKey(0)
    B, C, H, W = 2, 4, 16, 16
    seq_length = 8

    # Constant input currents in a range that produces a mix of spike rates.
    x = jax.random.uniform(key, (B, C, H, W), jnp.float32, minval=0.0,
                           maxval=2.0)

    enc = IFConstantCurrentEncoder(seq_length=seq_length)
    spikes = jax.block_until_ready(enc(x))

    assert spikes.shape == (seq_length, B, C, H, W), spikes.shape
    assert spikes.dtype == jnp.float32

    ref = _reference(x, seq_length, enc.tau_mem_inv, enc.v_th, enc.v_reset,
                     enc.dt)
    assert jnp.array_equal(spikes, ref), "mismatch vs pure-JAX reference"

    print("KERNEL_OK")
</pallas_src>

<mosaic_0001>
module attributes {stable_mosaic.version = 11 : i64} {
  func.func @_if_encoder_kernel(%arg0: i32, %arg1: i32, %arg2: memref<8x128xf32, #tpu.memory_space<vmem>>, %arg3: memref<8x8x128xf32, #tpu.memory_space<vmem>>, %arg4: memref<8x128xf32, #tpu.memory_space<vmem>>) attributes {dimension_semantics = [#tpu.dimension_semantics<parallel>, #tpu.dimension_semantics<arbitrary>], iteration_bounds = array<i64: 2, 1>, scalar_prefetch = 0 : i64, scratch_operands = 1 : i64, tpu.core_type = #tpu.core_type<tc>, window_params = [{transform_indices = @transform_0, window_bounds = array<i64: 8, 128>}, {transform_indices = @transform_1, window_bounds = array<i64: 8, 8, 128>}]} {
    %c0_i32 = arith.constant 0 : i32
    %0 = arith.cmpi eq, %arg1, %c0_i32 : i32
    %1 = arith.extui %0 : i1 to i32
    %c0_i32_0 = arith.constant 0 : i32
    %2 = arith.cmpi ne, %1, %c0_i32_0 : i32
    scf.if %2 {
      %cst_40 = arith.constant 0.000000e+00 : f32
      %121 = vector.broadcast %cst_40 : f32 to vector<8x128xf32>
      %c0_41 = arith.constant 0 : index
      %c0_42 = arith.constant 0 : index
      %122 = vector.load %arg4[%c0_41, %c0_42] : memref<8x128xf32, #tpu.memory_space<vmem>>, vector<8x128xf32>
      tpu.vector_store %arg4[%c0_41, %c0_42], %121 {strides = array<i32>} : memref<8x128xf32, #tpu.memory_space<vmem>>, vector<8x128xf32>,
    } else {
    }
    %c0_i32_1 = arith.constant 0 : i32
    %c1_i32 = arith.constant 1 : i32
    %3 = arith.muli %c0_i32_1, %c1_i32 : i32
    %c0_i32_2 = arith.constant 0 : i32
    %4 = arith.addi %c0_i32_2, %3 : i32
    %c8_i32 = arith.constant 8 : i32
    %5 = arith.muli %4, %c8_i32 : i32
    %6 = tpu.assume_multiple %5, 8 : i32
    %7 = arith.index_cast %6 : i32 to index
    %c0 = arith.constant 0 : index
    %8 = vector.load %arg2[%7, %c0] : memref<8x128xf32, #tpu.memory_space<vmem>>, vector<8x128xf32>
    %cst = arith.constant 0.000000e+00 : f32
    %9 = vector.broadcast %cst : f32 to vector<8x128xf32>
    %10 = arith.addf %8, %9 : vector<8x128xf32>
    %cst_3 = arith.constant 1.000000e-01 : f32
    %11 = vector.broadcast %cst_3 : f32 to vector<8x128xf32>
    %12 = arith.mulf %11, %10 : vector<8x128xf32>
    %13 = arith.index_cast %6 : i32 to index
    %c0_4 = arith.constant 0 : index
    %14 = vector.load %arg4[%13, %c0_4] : memref<8x128xf32, #tpu.memory_space<vmem>>, vector<8x128xf32>
    %cst_5 = arith.constant 0.899999976 : f32
    %15 = vector.broadcast %cst_5 : f32 to vector<8x128xf32>
    %16 = arith.mulf %15, %14 : vector<8x128xf32>
    %17 = arith.addf %12, %16 : vector<8x128xf32>
    %cst_6 = arith.constant 1.000000e+00 : f32
    %18 = vector.broadcast %cst_6 : f32 to vector<8x128xf32>
    %19 = arith.cmpf ogt, %17, %18 : vector<8x128xf32>
    %20 = arith.extui %19 : vector<8x128xi1> to vector<8x128xi32>
    %21 = arith.sitofp %20 : vector<8x128xi32> to vector<8x128xf32>
    %c0_7 = arith.constant 0 : index
    %22 = arith.index_cast %6 : i32 to index
    %c0_8 = arith.constant 0 : index
    %23 = vector.load %arg3[%c0_7, %22, %c0_8] : memref<8x8x128xf32, #tpu.memory_space<vmem>>, vector<1x8x128xf32>
    %24 = vector.shape_cast %23 : vector<1x8x128xf32> to vector<8x128xf32>
    %25 = vector.shape_cast %21 : vector<8x128xf32> to vector<1x8x128xf32>
    tpu.vector_store %arg3[%c0_7, %22, %c0_8], %25 {strides = array<i32>} : memref<8x8x128xf32, #tpu.memory_space<vmem>>, vector<1x8x128xf32>,
    %cst_9 = arith.constant 0.000000e+00 : f32
    %26 = vector.broadcast %cst_9 : f32 to vector<8x128xf32>
    %27 = arith.select %19, %26, %17 : vector<8x128xi1>, vector<8x128xf32>
    %cst_10 = arith.constant 0.899999976 : f32
    %28 = vector.broadcast %cst_10 : f32 to vector<8x128xf32>
    %29 = arith.mulf %28, %27 : vector<8x128xf32>
    %30 = arith.addf %12, %29 : vector<8x128xf32>
    %cst_11 = arith.constant 1.000000e+00 : f32
    %31 = vector.broadcast %cst_11 : f32 to vector<8x128xf32>
    %32 = arith.cmpf ogt, %30, %31 : vector<8x128xf32>
    %33 = arith.extui %32 : vector<8x128xi1> to vector<8x128xi32>
    %34 = arith.sitofp %33 : vector<8x128xi32> to vector<8x128xf32>
    %c1 = arith.constant 1 : index
    %35 = arith.index_cast %6 : i32 to index
    %c0_12 = arith.constant 0 : index
    %36 = vector.load %arg3[%c1, %35, %c0_12] : memref<8x8x128xf32, #tpu.memory_space<vmem>>, vector<1x8x128xf32>
    %37 = vector.shape_cast %36 : vector<1x8x128xf32> to vector<8x128xf32>
    %38 = vector.shape_cast %34 : vector<8x128xf32> to vector<1x8x128xf32>
    tpu.vector_store %arg3[%c1, %35, %c0_12], %38 {strides = array<i32>} : memref<8x8x128xf32, #tpu.memory_space<vmem>>, vector<1x8x128xf32>,
    %cst_13 = arith.constant 0.000000e+00 : f32
    %39 = vector.broadcast %cst_13 : f32 to vector<8x128xf32>
    %40 = arith.select %32, %39, %30 : vector<8x128xi1>, vector<8x128xf32>
    %cst_14 = arith.constant 0.899999976 : f32
    %41 = vector.broadcast %cst_14 : f32 to vector<8x128xf32>
    %42 = arith.mulf %41, %40 : vector<8x128xf32>
    %43 = arith.addf %12, %42 : vector<8x128xf32>
    %cst_15 = arith.constant 1.000000e+00 : f32
    %44 = vector.broadcast %cst_15 : f32 to vector<8x128xf32>
    %45 = arith.cmpf ogt, %43, %44 : vector<8x128xf32>
    %46 = arith.extui %45 : vector<8x128xi1> to vector<8x128xi32>
    %47 = arith.sitofp %46 : vector<8x128xi32> to vector<8x128xf32>
    %c2 = arith.constant 2 : index
    %48 = arith.index_cast %6 : i32 to index
    %c0_16 = arith.constant 0 : index
    %49 = vector.load %arg3[%c2, %48, %c0_16] : memref<8x8x128xf32, #tpu.memory_space<vmem>>, vector<1x8x128xf32>
    %50 = vector.shape_cast %49 : vector<1x8x128xf32> to vector<8x128xf32>
    %51 = vector.shape_cast %47 : vector<8x128xf32> to vector<1x8x128xf32>
    tpu.vector_store %arg3[%c2, %48, %c0_16], %51 {strides = array<i32>} : memref<8x8x128xf32, #tpu.memory_space<vmem>>, vector<1x8x128xf32>,
    %cst_17 = arith.constant 0.000000e+00 : f32
    %52 = vector.broadcast %cst_17 : f32 to vector<8x128xf32>
    %53 = arith.select %45, %52, %43 : vector<8x128xi1>, vector<8x128xf32>
    %cst_18 = arith.constant 0.899999976 : f32
    %54 = vector.broadcast %cst_18 : f32 to vector<8x128xf32>
    %55 = arith.mulf %54, %53 : vector<8x128xf32>
    %56 = arith.addf %12, %55 : vector<8x128xf32>
    %cst_19 = arith.constant 1.000000e+00 : f32
    %57 = vector.broadcast %cst_19 : f32 to vector<8x128xf32>
    %58 = arith.cmpf ogt, %56, %57 : vector<8x128xf32>
    %59 = arith.extui %58 : vector<8x128xi1> to vector<8x128xi32>
    %60 = arith.sitofp %59 : vector<8x128xi32> to vector<8x128xf32>
    %c3 = arith.constant 3 : index
    %61 = arith.index_cast %6 : i32 to index
    %c0_20 = arith.constant 0 : index
    %62 = vector.load %arg3[%c3, %61, %c0_20] : memref<8x8x128xf32, #tpu.memory_space<vmem>>, vector<1x8x128xf32>
    %63 = vector.shape_cast %62 : vector<1x8x128xf32> to vector<8x128xf32>
    %64 = vector.shape_cast %60 : vector<8x128xf32> to vector<1x8x128xf32>
    tpu.vector_store %arg3[%c3, %61, %c0_20], %64 {strides = array<i32>} : memref<8x8x128xf32, #tpu.memory_space<vmem>>, vector<1x8x128xf32>,
    %cst_21 = arith.constant 0.000000e+00 : f32
    %65 = vector.broadcast %cst_21 : f32 to vector<8x128xf32>
    %66 = arith.select %58, %65, %56 : vector<8x128xi1>, vector<8x128xf32>
    %cst_22 = arith.constant 0.899999976 : f32
    %67 = vector.broadcast %cst_22 : f32 to vector<8x128xf32>
    %68 = arith.mulf %67, %66 : vector<8x128xf32>
    %69 = arith.addf %12, %68 : vector<8x128xf32>
    %cst_23 = arith.constant 1.000000e+00 : f32
    %70 = vector.broadcast %cst_23 : f32 to vector<8x128xf32>
    %71 = arith.cmpf ogt, %69, %70 : vector<8x128xf32>
    %72 = arith.extui %71 : vector<8x128xi1> to vector<8x128xi32>
    %73 = arith.sitofp %72 : vector<8x128xi32> to vector<8x128xf32>
    %c4 = arith.constant 4 : index
    %74 = arith.index_cast %6 : i32 to index
    %c0_24 = arith.constant 0 : index
    %75 = vector.load %arg3[%c4, %74, %c0_24] : memref<8x8x128xf32, #tpu.memory_space<vmem>>, vector<1x8x128xf32>
    %76 = vector.shape_cast %75 : vector<1x8x128xf32> to vector<8x128xf32>
    %77 = vector.shape_cast %73 : vector<8x128xf32> to vector<1x8x128xf32>
    tpu.vector_store %arg3[%c4, %74, %c0_24], %77 {strides = array<i32>} : memref<8x8x128xf32, #tpu.memory_space<vmem>>, vector<1x8x128xf32>,
    %cst_25 = arith.constant 0.000000e+00 : f32
    %78 = vector.broadcast %cst_25 : f32 to vector<8x128xf32>
    %79 = arith.select %71, %78, %69 : vector<8x128xi1>, vector<8x128xf32>
    %cst_26 = arith.constant 0.899999976 : f32
    %80 = vector.broadcast %cst_26 : f32 to vector<8x128xf32>
    %81 = arith.mulf %80, %79 : vector<8x128xf32>
    %82 = arith.addf %12, %81 : vector<8x128xf32>
    %cst_27 = arith.constant 1.000000e+00 : f32
    %83 = vector.broadcast %cst_27 : f32 to vector<8x128xf32>
    %84 = arith.cmpf ogt, %82, %83 : vector<8x128xf32>
    %85 = arith.extui %84 : vector<8x128xi1> to vector<8x128xi32>
    %86 = arith.sitofp %85 : vector<8x128xi32> to vector<8x128xf32>
    %c5 = arith.constant 5 : index
    %87 = arith.index_cast %6 : i32 to index
    %c0_28 = arith.constant 0 : index
    %88 = vector.load %arg3[%c5, %87, %c0_28] : memref<8x8x128xf32, #tpu.memory_space<vmem>>, vector<1x8x128xf32>
    %89 = vector.shape_cast %88 : vector<1x8x128xf32> to vector<8x128xf32>
    %90 = vector.shape_cast %86 : vector<8x128xf32> to vector<1x8x128xf32>
    tpu.vector_store %arg3[%c5, %87, %c0_28], %90 {strides = array<i32>} : memref<8x8x128xf32, #tpu.memory_space<vmem>>, vector<1x8x128xf32>,
    %cst_29 = arith.constant 0.000000e+00 : f32
    %91 = vector.broadcast %cst_29 : f32 to vector<8x128xf32>
    %92 = arith.select %84, %91, %82 : vector<8x128xi1>, vector<8x128xf32>
    %cst_30 = arith.constant 0.899999976 : f32
    %93 = vector.broadcast %cst_30 : f32 to vector<8x128xf32>
    %94 = arith.mulf %93, %92 : vector<8x128xf32>
    %95 = arith.addf %12, %94 : vector<8x128xf32>
    %cst_31 = arith.constant 1.000000e+00 : f32
    %96 = vector.broadcast %cst_31 : f32 to vector<8x128xf32>
    %97 = arith.cmpf ogt, %95, %96 : vector<8x128xf32>
    %98 = arith.extui %97 : vector<8x128xi1> to vector<8x128xi32>
    %99 = arith.sitofp %98 : vector<8x128xi32> to vector<8x128xf32>
    %c6 = arith.constant 6 : index
    %100 = arith.index_cast %6 : i32 to index
    %c0_32 = arith.constant 0 : index
    %101 = vector.load %arg3[%c6, %100, %c0_32] : memref<8x8x128xf32, #tpu.memory_space<vmem>>, vector<1x8x128xf32>
    %102 = vector.shape_cast %101 : vector<1x8x128xf32> to vector<8x128xf32>
    %103 = vector.shape_cast %99 : vector<8x128xf32> to vector<1x8x128xf32>
    tpu.vector_store %arg3[%c6, %100, %c0_32], %103 {strides = array<i32>} : memref<8x8x128xf32, #tpu.memory_space<vmem>>, vector<1x8x128xf32>,
    %cst_33 = arith.constant 0.000000e+00 : f32
    %104 = vector.broadcast %cst_33 : f32 to vector<8x128xf32>
    %105 = arith.select %97, %104, %95 : vector<8x128xi1>, vector<8x128xf32>
    %cst_34 = arith.constant 0.899999976 : f32
    %106 = vector.broadcast %cst_34 : f32 to vector<8x128xf32>
    %107 = arith.mulf %106, %105 : vector<8x128xf32>
    %108 = arith.addf %12, %107 : vector<8x128xf32>
    %cst_35 = arith.constant 1.000000e+00 : f32
    %109 = vector.broadcast %cst_35 : f32 to vector<8x128xf32>
    %110 = arith.cmpf ogt, %108, %109 : vector<8x128xf32>
    %111 = arith.extui %110 : vector<8x128xi1> to vector<8x128xi32>
    %112 = arith.sitofp %111 : vector<8x128xi32> to vector<8x128xf32>
    %c7 = arith.constant 7 : index
    %113 = arith.index_cast %6 : i32 to index
    %c0_36 = arith.constant 0 : index
    %114 = vector.load %arg3[%c7, %113, %c0_36] : memref<8x8x128xf32, #tpu.memory_space<vmem>>, vector<1x8x128xf32>
    %115 = vector.shape_cast %114 : vector<1x8x128xf32> to vector<8x128xf32>
    %116 = vector.shape_cast %112 : vector<8x128xf32> to vector<1x8x128xf32>
    tpu.vector_store %arg3[%c7, %113, %c0_36], %116 {strides = array<i32>} : memref<8x8x128xf32, #tpu.memory_space<vmem>>, vector<1x8x128xf32>,
    %cst_37 = arith.constant 0.000000e+00 : f32
    %117 = vector.broadcast %cst_37 : f32 to vector<8x128xf32>
    %118 = arith.select %110, %117, %108 : vector<8x128xi1>, vector<8x128xf32>
    %119 = arith.index_cast %6 : i32 to index
    %c0_38 = arith.constant 0 : index
    %120 = vector.load %arg4[%119, %c0_38] : memref<8x128xf32, #tpu.memory_space<vmem>>, vector<8x128xf32>
    tpu.vector_store %arg4[%119, %c0_38], %118 {strides = array<i32>} : memref<8x128xf32, #tpu.memory_space<vmem>>, vector<8x128xf32>,
    %c1_i32_39 = arith.constant 1 : i32
    return
  }
  func.func @transform_0(%arg0: i32, %arg1: i32) -> (i32, i32) {
    %c0_i32 = arith.constant 0 : i32
    %c0_i32_0 = arith.constant 0 : i32
    return %arg0, %c0_i32 : i32, i32
  }
  func.func @transform_1(%arg0: i32, %arg1: i32) -> (i32, i32, i32) {
    %c0_i32 = arith.constant 0 : i32
    %c0_i32_0 = arith.constant 0 : i32
    return %arg1, %arg0, %c0_i32 : i32, i32, i32
  }
}

</mosaic_0001>

<llo_original>
// kernel: tpu_custom_call.1
$region0: #{tpu_custom_call.1}
  #allocation0 [shape = 'u32[]', space=smem, size = 0x4, offset = 0x4, fixed_abs, tag = 'smem constant byte address 0x4 - core index']
  #allocation1 [shape = 'u32[72,128]{1,0:T(1,128)}', space=vmem, size = 0x9000, scoped, tag = 'internal scratch']
  #allocation2 [shape = 'f32[8,128]{1,0:T(8,128)}', space=vmem, size = 0x1000, scoped, tag = 'scratch operand']
  %s0 = inlined_call_operand.hbm [shape: f32[16,128], index: 0, kind: input, shape index: {}]
  %s1 = inlined_call_operand.hbm [shape: f32[8,16,128], index: 1, kind: output, shape index: {}]
  %s2 = sld [smem:[#allocation0]]
  $region45: #{tpu_custom_call.1} parent=0
    _
  %s4 = ssub.s32 1, %s2
  %s5 = scalar_select 0, %s4, %s2
  $region1: #{tpu_custom_call.1} parent=0
    #allocation3 [shape = 'u8[8192]{0}', space=vmem, size = 0x2000, scoped, tag = 'input window, operand 0']
    #allocation4 [shape = 's32[2]{0}', space=sflag, size = 0x8, scoped, tag = 'scoped memory for tpu_custom_call.1']
    #allocation5 [shape = 's32[2]{0}', space=sflag, size = 0x8, scoped, tag = 'scoped memory for tpu_custom_call.1']
    #allocation6 [shape = 'u8[65536]{0}', space=vmem, size = 0x10000, scoped, tag = 'output window, operand 0']
    %6 = vsyncpa [#allocation4], 0
    %s7 = scalar_lea.sflag [#allocation4], 1
    %8 = vsyncpa %s7, 0
    %9 = vsyncpa [#allocation5], 0
    %s10 = scalar_lea.sflag [#allocation5], 1
    %11 = vsyncpa %s10, 0
    loop: start=0, step=1, limit=4
    $region2: #{tpu_custom_call.1} parent=1 // loop_pre_header
      _
    $region3: #{tpu_custom_call.1} parent=1 // loop_header
      %s13 = sphi 0, %s17
      %p14 = scmp.ge.s32.totalorder %s13, 4
      %s20 = sphi 0, %s32
      %s21 = sphi 0, %s28
      %s22 = sphi 0, %s20
      %s23 = sphi 0, %s21
      %s24 = sphi 0, %s22
      %s25 = sphi 0, %s23
      %s35 = sphi 0, %s37
      %s38 = sphi 0, %s35
      %s39 = sphi 0, %s38
      %s55 = sphi 0, %s39
      %s63 = sphi 0, %s65
      %s66 = sphi 0, %s63
      %s67 = sphi 0, %s66
      %s83 = sphi 0, %s67
    $region4: #{tpu_custom_call.1} parent=1 // loop_header_branch
      %16 = sbr.rel (%p14) target = $region8
    $region5: #{tpu_custom_call.1} parent=1 // loop_body
      %s18 = ssub.s32 %s13, 1
      %s19 = ssub.s32 %s13, 2
      %s26 = sadd.s32 1, %s21
      %p27 = scmp.ge.s32.totalorder %s26, 1
      %s28 = scalar_select %p27, 0, %s26
      %s29 = sadd.s32 1, %s20
      %s30 = scalar_select %p27, %s29, %s20
      %p31 = scmp.ge.s32.totalorder %s30, 2
      %s32 = scalar_select %p31, 0, %s30
      %s33 = ssub.s32 %s20, %s32
      %p34 = scmp.eq.s32.totalorder %s33, 0
      %s36 = sadd.s32 %s35, 1
      %s37 = scalar_select %p34, %s35, %s36
      %p40 = pneg %p34
      %p41 = scmp.eq.s32.totalorder %s13, 1
      %p42 = por %p40, %p41
      %p43 = scmp.ne.s32.totalorder %s35, %s38
      %p44 = scmp.eq.s32.totalorder %s13, 0
      %p45 = por %p43, %p44
      %p46 = scmp.ne.s32.totalorder %s35, %s38
      %p47 = scmp.eq.s32.totalorder %s18, 1
      %p48 = por %p46, %p47
      %p49 = scmp.ne.s32.totalorder %s38, %s39
      %p50 = scmp.eq.s32.totalorder %s18, 0
      %p51 = por %p49, %p50
      %p52 = scmp.ne.s32.totalorder %s38, %s39
      %p53 = scmp.eq.s32.totalorder %s19, 1
      %p54 = por %p52, %p53
      %p56 = scmp.ne.s32.totalorder %s39, %s55
      %p57 = scmp.eq.s32.totalorder %s19, 0
      %p58 = por %p56, %p57
      %s59 = ssub.s32 %s21, %s28
      %s60 = ssub.s32 %s20, %s32
      %s61 = sor.u32 %s59, %s60
      %p62 = scmp.eq.s32.totalorder %s61, 0
      %s64 = sadd.s32 %s63, 1
      %s65 = scalar_select %p62, %s63, %s64
      %p68 = pneg %p62
      %p69 = scmp.eq.s32.totalorder %s13, 1
      %p70 = por %p68, %p69
      %p71 = scmp.ne.s32.totalorder %s63, %s66
      %p72 = scmp.eq.s32.totalorder %s13, 0
      %p73 = por %p71, %p72
      %p74 = scmp.ne.s32.totalorder %s63, %s66
      %p75 = scmp.eq.s32.totalorder %s18, 1
      %p76 = por %p74, %p75
      %p77 = scmp.ne.s32.totalorder %s66, %s67
      %p78 = scmp.eq.s32.totalorder %s18, 0
      %p79 = por %p77, %p78
      %p80 = scmp.ne.s32.totalorder %s66, %s67
      %p81 = scmp.eq.s32.totalorder %s19, 1
      %p82 = por %p80, %p81
      %p84 = scmp.ne.s32.totalorder %s67, %s83
      %p85 = scmp.eq.s32.totalorder %s19, 0
      %p86 = por %p84, %p85
      %p87 = scmp.le.s32.totalorder 1, %s13
      %p88 = scmp.lt.s32.totalorder %s13, 3
      %p89 = pnand %p87, %p88
      %p90 = pneg %p89
      // Predicated region
      $region9: #{tpu_custom_call.1} parent=5 // pred_check
        _
      $region10: #{tpu_custom_call.1} parent=5 // pred_check_branch
        %92 = sbr.rel (%p89) target = $region12
      $region11: #{tpu_custom_call.1} parent=5 // pred_region
        %s93 = ssub.s32 %s13, 1
      $region12: #{tpu_custom_call.1} parent=5 // pred_fallthru
        _
      %p94 = scmp.lt.s32.totalorder %s13, 2
      // Predicated region
      $region13: #{tpu_custom_call.1} parent=5 // pred_check
        %p95 = pneg %p94
      $region14: #{tpu_custom_call.1} parent=5 // pred_check_branch
        %97 = sbr.rel (%p95) target = $region16
      $region15: #{tpu_custom_call.1} parent=5 // pred_region
        // Predicated region
        $region17: #{tpu_custom_call.1} parent=15 // pred_check
          %p98 = pneg %p45
        $region18: #{tpu_custom_call.1} parent=15 // pred_check_branch
          %100 = sbr.rel (%p98) target = $region20
        $region19: #{tpu_custom_call.1} parent=15 // pred_region
          %s101 = sand.u32 %s35, 1
          %s102 = scalar_lea.sflag [#allocation4], %s101
          %s103 = sand.u32 %s35, 1
          %s104 = smul.addr %s103, 8
          %s105 = scalar_lea.vmem [#allocation3], %s104
          %107 = vsyncadd %s102, 0
          %s108 = smul.addr %s20, 8
          %s109 = scalar_lea.hbm %s0, %s108
          %s111 = sshll.u32 %s109, 4
          %s112 = int_to_ptr.hbm [resolvable:$true] %s111
          %s113 = sshll.u32 %s105, 4
          %s114 = int_to_ptr.vmem [resolvable:$true] %s113
          %116 = dma.hbm_to_vmem [thread:$0]  %s112, 128, %s114, %s102
        $region20: #{tpu_custom_call.1} parent=15 // pred_fallthru
          _
      $region16: #{tpu_custom_call.1} parent=5 // pred_fallthru
        _
      %p117 = scmp.le.s32.totalorder 1, %s13
      %p118 = scmp.lt.s32.totalorder %s13, 3
      %p119 = pnand %p117, %p118
      %p120 = pneg %p119
      // Predicated region
      $region21: #{tpu_custom_call.1} parent=5 // pred_check
        _
      $region22: #{tpu_custom_call.1} parent=5 // pred_check_branch
        %122 = sbr.rel (%p119) target = $region24
      $region23: #{tpu_custom_call.1} parent=5 // pred_region
        %s123 = ssub.s32 %s13, 1
        %s124 = sand.u32 %s38, 1
        %s125 = scalar_lea.sflag [#allocation4], %s124
        %s126 = sand.u32 %s38, 1
        %s127 = smul.addr %s126, 8
        %s128 = scalar_lea.vmem [#allocation3], %s127
        // Predicated region
        $region25: #{tpu_custom_call.1} parent=23 // pred_check
          %p129 = pneg %p51
        $region26: #{tpu_custom_call.1} parent=23 // pred_check_branch
          %131 = sbr.rel (%p129) target = $region28
        $region27: #{tpu_custom_call.1} parent=23 // pred_region
          %133 = dma.done %s125, 128
        $region28: #{tpu_custom_call.1} parent=23 // pred_fallthru
          _
        %s134 = sand.u32 %s38, 1
        %s135 = scalar_lea.sflag [#allocation4], %s134
        %s136 = sand.u32 %s38, 1
        %s137 = smul.addr %s136, 8
        %s138 = scalar_lea.vmem [#allocation3], %s137
        %p139 = pneg %p51
        %p140 = pneg %p48
        %p141 = pneg %p79
        %p142 = pneg %p76
        %s143 = sand.u32 %s66, 1
        %s144 = scalar_lea.sflag [#allocation5], %s143
        %s145 = sand.u32 %s66, 1
        %s146 = smul.addr %s145, 64
        %s147 = scalar_lea.vmem [#allocation6], %s146
        %s148 = smul.u32 8, %s23
        %p149 = scmp.eq.s32.totalorder %s23, 0
        // Predicated region
        $region29: #{tpu_custom_call.1} parent=23 // pred_check
          %p150 = pneg %p149
        $region30: #{tpu_custom_call.1} parent=23 // pred_check_branch
          %152 = sbr.rel (%p150) target = $region32
        $region31: #{tpu_custom_call.1} parent=23 // pred_region
          %153 = vst [vmem:[#allocation2] sm:$0xff] 0.0
        $region32: #{tpu_custom_call.1} parent=23 // pred_fallthru
          _
        %v154 = vld [vmem:[%s128] sm:$0xff]
        %v155 = vadd.f32 %v154, 0.0
        %v156 = vmul.f32 %v155, 0.1
        %v157 = vld [vmem:[#allocation2] sm:$0xff]
        %v158 = vmul.f32 %v157, 0.9
        %v159 = vadd.f32 %v156, %v158
        %vm160 = vcmp.gt.f32.partialorder %v159, 1.0
        %v161 = vsel %vm160, 1, 0
        %v162 = vcvt.s32.f32 %v161
        %163 = vst [vmem:[%s147] sm:$0xff] %v162
        %v164 = vsel %vm160, 0.0, %v159
        %v165 = vmul.f32 %v164, 0.9
        %v166 = vadd.f32 %v156, %v165
        %vm167 = vcmp.gt.f32.partialorder %v166, 1.0
        %v168 = vsel %vm167, 1, 0
        %v169 = vcvt.s32.f32 %v168
        %s170 = sadd.s32 0, 8
        %s171 = scalar_lea.vmem %s147, %s170 [#allocation6]
        %172 = vst [vmem:[%s171] sm:$0xff] %v169
        %v173 = vsel %vm167, 0.0, %v166
        %v174 = vmul.f32 %v173, 0.9
        %v175 = vadd.f32 %v156, %v174
        %vm176 = vcmp.gt.f32.partialorder %v175, 1.0
        %v177 = vsel %vm176, 1, 0
        %v178 = vcvt.s32.f32 %v177
        %s179 = sadd.s32 0, 16
        %s180 = scalar_lea.vmem %s147, %s179 [#allocation6]
        %181 = vst [vmem:[%s180] sm:$0xff] %v178
        %v182 = vsel %vm176, 0.0, %v175
        %v183 = vmul.f32 %v182, 0.9
        %v184 = vadd.f32 %v156, %v183
        %vm185 = vcmp.gt.f32.partialorder %v184, 1.0
        %v186 = vsel %vm185, 1, 0
        %v187 = vcvt.s32.f32 %v186
        %s188 = sadd.s32 0, 24
        %s189 = scalar_lea.vmem %s147, %s188 [#allocation6]
        %190 = vst [vmem:[%s189] sm:$0xff] %v187
        %v191 = vsel %vm185, 0.0, %v184
        %v192 = vmul.f32 %v191, 0.9
        %v193 = vadd.f32 %v156, %v192
        %vm194 = vcmp.gt.f32.partialorder %v193, 1.0
        %v195 = vsel %vm194, 1, 0
        %v196 = vcvt.s32.f32 %v195
        %s197 = sadd.s32 0, 32
        %s198 = scalar_lea.vmem %s147, %s197 [#allocation6]
        %199 = vst [vmem:[%s198] sm:$0xff] %v196
        %v200 = vsel %vm194, 0.0, %v193
        %v201 = vmul.f32 %v200, 0.9
        %v202 = vadd.f32 %v156, %v201
        %vm203 = vcmp.gt.f32.partialorder %v202, 1.0
        %v204 = vsel %vm203, 1, 0
        %v205 = vcvt.s32.f32 %v204
        %s206 = sadd.s32 0, 40
        %s207 = scalar_lea.vmem %s147, %s206 [#allocation6]
        %208 = vst [vmem:[%s207] sm:$0xff] %v205
        %v209 = vsel %vm203, 0.0, %v202
        %v210 = vmul.f32 %v209, 0.9
        %v211 = vadd.f32 %v156, %v210
        %vm212 = vcmp.gt.f32.partialorder %v211, 1.0
        %v213 = vsel %vm212, 1, 0
        %v214 = vcvt.s32.f32 %v213
        %s215 = sadd.s32 0, 48
        %s216 = scalar_lea.vmem %s147, %s215 [#allocation6]
        %217 = vst [vmem:[%s216] sm:$0xff] %v214
        %v218 = vsel %vm212, 0.0, %v211
        %v219 = vmul.f32 %v218, 0.9
        %v220 = vadd.f32 %v156, %v219
        %vm221 = vcmp.gt.f32.partialorder %v220, 1.0
        %v222 = vsel %vm221, 1, 0
        %v223 = vcvt.s32.f32 %v222
        %s224 = sadd.s32 0, 56
        %s225 = scalar_lea.vmem %s147, %s224 [#allocation6]
        %226 = vst [vmem:[%s225] sm:$0xff] %v223
        %v227 = vsel %vm221, 0.0, %v220
        %228 = vst [vmem:[#allocation2] sm:$0xff] %v227
        %s229 = sand.u32 %s66, 1
        %s230 = scalar_lea.sflag [#allocation5], %s229
        %s231 = sand.u32 %s66, 1
        %s232 = smul.addr %s231, 64
        %s233 = scalar_lea.vmem [#allocation6], %s232
        // Predicated region
        $region33: #{tpu_custom_call.1} parent=23 // pred_check
          %p234 = pneg %p76
        $region34: #{tpu_custom_call.1} parent=23 // pred_check_branch
          %236 = sbr.rel (%p234) target = $region36
        $region35: #{tpu_custom_call.1} parent=23 // pred_region
          %s237 = smul.u32 8, %s23
          %239 = vsyncadd %s230, 0
          %s240 = smul.addr %s237, 2
          %s241 = sadd.s32 %s22, %s240
          %s242 = smul.addr %s241, 8
          %s243 = scalar_lea.hbm %s1, %s242
          %s244 = sshll.u32 %s233, 4
          %s245 = int_to_ptr.vmem [resolvable:$true] %s244
          %s246 = sshll.u32 %s243, 4
          %s247 = int_to_ptr.hbm [resolvable:$true] %s246
          %252 = dma.vmem_to_hbm [thread:$0]  %s245, 1024, %s247, %s230, 128, 256, 8
        $region36: #{tpu_custom_call.1} parent=23 // pred_fallthru
          _
      $region24: #{tpu_custom_call.1} parent=5 // pred_fallthru
        _
      %p253 = scmp.le.s32.totalorder 2, %s13
      // Predicated region
      $region37: #{tpu_custom_call.1} parent=5 // pred_check
        %p254 = pneg %p253
      $region38: #{tpu_custom_call.1} parent=5 // pred_check_branch
        %256 = sbr.rel (%p254) target = $region40
      $region39: #{tpu_custom_call.1} parent=5 // pred_region
        %s257 = ssub.s32 %s13, 2
        // Predicated region
        $region41: #{tpu_custom_call.1} parent=39 // pred_check
          %p258 = pneg %p82
        $region42: #{tpu_custom_call.1} parent=39 // pred_check_branch
          %260 = sbr.rel (%p258) target = $region44
        $region43: #{tpu_custom_call.1} parent=39 // pred_region
          %s261 = sand.u32 %s67, 1
          %s262 = scalar_lea.sflag [#allocation5], %s261
          %s263 = sand.u32 %s67, 1
          %s264 = smul.addr %s263, 64
          %s265 = scalar_lea.vmem [#allocation6], %s264
          %267 = dma.done %s262, 1024
        $region44: #{tpu_custom_call.1} parent=39 // pred_fallthru
          _
      $region40: #{tpu_custom_call.1} parent=5 // pred_fallthru
        _
    $region6: #{tpu_custom_call.1} parent=1 // loop_footer
      %s17 = sadd.s32 1, %s13
    $region7: #{tpu_custom_call.1} parent=1 // loop_footer_branch
      %12 = sbr.rel target = $region3
    $region8: #{tpu_custom_call.1} parent=1 // loop_exit
      _
    %268 = vsyncpa [#allocation4], 1
    %s269 = scalar_lea.sflag [#allocation4], 1
    %270 = vsyncpa %s269, 1
    %271 = vsyncpa [#allocation5], 1
    %s272 = scalar_lea.sflag [#allocation5], 1
    %273 = vsyncpa %s272, 1

</llo_original>
